<compile_context>
chip_gen: v7x
topology: tpu7x:2x2x1
jax: 0.10.0
libtpu: 0.0.40
codegen_flags: <defaults>
</compile_context>

<pallas_src>
import functools
import math

import jax
import jax.numpy as jnp
from jax import lax
from jax.experimental import pallas as pl
from jax.experimental.pallas import tpu as pltpu


def _round_up(x: int, m: int) -> int:
    return ((x + m - 1) // m) * m


@functools.lru_cache(maxsize=None)
def _pltpu_roll_matches_jnp() -> bool:
    """One-time convention probe: True iff pltpu.roll(x, s) == jnp.roll(x, s)."""
    def k(x_ref, o_ref):
        o_ref[...] = pltpu.roll(x_ref[...], 1, axis=1)

    x = jnp.arange(8 * 128, dtype=jnp.float32).reshape(8, 128)
    y = pl.pallas_call(k, out_shape=jax.ShapeDtypeStruct((8, 128), jnp.float32))(x)
    return bool(y[0, 1] == x[0, 0])


def _rel_attn_kernel(q_ref, k_ref, v_ref, p_ref, bk_ref, bp_ref, m_ref, o_ref,
                     acc_ref, *, head, roll_like_jnp):
    tq, H = q_ref.shape[1], q_ref.shape[2]
    T = k_ref.shape[1]
    P_pad = p_ref.shape[1]               # lane-aligned (>= 2T-1)
    d = H // head
    inv_sqrt_d = 1.0 / math.sqrt(d)

    q = q_ref[0]                          # (tq, H)
    k = k_ref[0]                          # (T, H)
    v = v_ref[0]                          # (T, H)
    p = p_ref[0]                          # (P_pad, H)

    # bias_k / bias_p arrive flattened head-major to (1, H): one broadcast add
    # for all heads instead of per-head (1, d) adds.
    qk = q + bk_ref[...]                  # (tq, H)
    qp = q + bp_ref[...]                  # (tq, H)

    masked = m_ref[0] == 0                # (1, T); broadcasts over query rows
    neg = jnp.finfo(jnp.float32).min      # scores stay f32

    # rel_shift target: shifted[t, j] = score_p[t, (T-1) - t + j] with t the GLOBAL
    # query index.  Per-row left-rotation amount is (T-1) - t; decompose into bits
    # and apply log2(T) static lane rotations gated by per-row selects.
    q_start = pl.program_id(1) * tq
    row = lax.broadcasted_iota(jnp.int32, (tq, 1), 0)
    amount = (T - 1) - (q_start + row)    # (tq, 1), in [0, T-1]
    bit_stages = []
    s = 1
    while s < T:
        bit_stages.append(((amount & s) != 0, s))
        s <<= 1

    # Contract the last dim of both operands (A @ B^T) — no transpose before the MXU.
    dn = (((1,), (1,)), ((), ()))

    for h in range(head):                 # static unroll over heads
        hs = slice(h * d, (h + 1) * d)
        k_h = k[:, hs]                    # (T, d)
        v_h = v[:, hs]                    # (T, d)
        p_h = p[:, hs]                    # (P_pad, d)

        score_k = lax.dot_general(qk[:, hs], k_h, dn,
                                  preferred_element_type=jnp.float32)   # (tq, T)
        score_p = lax.dot_general(qp[:, hs], p_h, dn,
                                  preferred_element_type=jnp.float32)   # (tq, P_pad)

        x = score_p
        for bit_set, shift in bit_stages:
            # left-rotate the rows whose rotation amount has this bit set; a single
            # XLU lane rotation on the 128-aligned P_pad axis.
            sh = (P_pad - shift) if roll_like_jnp else shift
            x = jnp.where(bit_set, pltpu.roll(x, sh, axis=1), x)
        shifted = x[:, :T]                # == score_p[t, (T-1) - t + j]

        score = (score_k + shifted) * inv_sqrt_d
        score = jnp.where(masked, neg, score)

        m_max = jnp.max(score, axis=-1, keepdims=True)
        e = jnp.exp(score - m_max)
        denom = jnp.sum(e, axis=-1, keepdims=True)
        attn = e * pl.reciprocal(denom, approx=True)        # EUP, not a (tq,T) divide
        # Post-softmax zeroing kept: exactly reproduces the module for fully-masked
        # query rows (uniform weights -> zeros).
        attn = jnp.where(masked, 0.0, attn)
        # TODO(synk): attention dropout is identity here (eval-mode semantics).

        ctx_h = jnp.dot(attn.astype(v_h.dtype), v_h,
                        preferred_element_type=jnp.float32)             # (tq, d)
        acc_ref[:, hs] = ctx_h            # store per head: bounds live ranges

    # Single dense (tq, H) store; HBM writeback is one DMA per grid step.
    o_ref[0] = acc_ref[...].astype(o_ref.dtype)


def _dense(x, w, b=None):
    # torch.nn.Linear: y = x @ W^T + b, W is (out, in)
    y = jnp.einsum("bti,oi->bto", x, w)
    if b is not None:
        y = y + b
    return y


def _pick_q_tile(T, q_tile):
    if q_tile is not None:
        assert T % q_tile == 0
        return q_tile
    if T <= 512:
        return T
    for cand in (512, 256, 128, 64, 32, 16, 8):
        if T % cand == 0:
            return cand
    return T


def _vmem_limit_bytes(T, tq, P_pad, H, itemsize):
    """Raise the scoped-VMEM limit only when the working set actually needs it."""
    blocks = (2 * tq + 2 * T + P_pad) * H * itemsize      # q, out, k, v, p per buffer
    blocks *= 2                                            # double-buffered
    inter = 8 * tq * (P_pad + T) * 4                       # f32 score / exp working set
    est = blocks + inter + tq * H * 4 + 2 * H * itemsize + 4 * T
    if est < 16 * 2**20:
        return None                                        # defaults are fine
    try:
        cap = int(pltpu.get_tpu_info().vmem_capacity_bytes)
    except Exception:
        cap = 128 * 2**20
    return int(min(cap * 3 // 4, max(32 * 2**20, 2 * est)))


def rel_position_mha(params, query, key, value, pos_emb, mask=None,
                     *, compute_dtype=jnp.bfloat16, q_tile=None):
    head = params["head_size"]
    B, T, H = query.shape
    Pb, P = pos_emb.shape[0], pos_emb.shape[1]
    assert H % head == 0
    assert P == 2 * T - 1, "pos_emb length must be 2*T - 1 for self-attention rel_shift"
    assert Pb in (1, B)

    # Projections stay as XLA GEMMs; activations keep (B, T, H) layout.  For
    # self-attention (same tensor for q/k/v) fuse the three GEMMs into one.
    if (query is key) and (key is value):
        Wqkv = jnp.concatenate([params["Wq"], params["Wk"], params["Wv"]], axis=0)
        bqkv = jnp.concatenate([params["bq"], params["bk_lin"], params["bv"]], axis=0)
        q, k, v = jnp.split(_dense(query, Wqkv, bqkv), 3, axis=-1)
    else:
        q = _dense(query, params["Wq"], params["bq"])
        k = _dense(key, params["Wk"], params["bk_lin"])
        v = _dense(value, params["Wv"], params["bv"])
    p = _dense(pos_emb, params["Wpos"])                    # (Pb, P, H); once if Pb == 1

    # Lane-align the relative-position axis; padded rows are zeros and are never
    # read by the kept [:T] columns after the shift.
    P_pad = max(_round_up(P, 128), 128)
    p = jnp.pad(p, ((0, 0), (0, P_pad - P), (0, 0)))

    cdt = compute_dtype
    q, k, v, p = (a.astype(cdt) for a in (q, k, v, p))
    bias_k = params["bias_k"].reshape(1, H).astype(cdt)    # head-major flatten
    bias_p = params["bias_p"].reshape(1, H).astype(cdt)
    if mask is None:
        mask = jnp.ones((B, 1, T), jnp.int32)
    mask_i = mask.astype(jnp.int32)                        # (B, 1, T)

    tq = _pick_q_tile(T, q_tile)
    nq = T // tq

    # Batch-invariant rel-pos table stays resident across the whole grid.
    pos_map = (lambda b, i: (0, 0, 0)) if Pb == 1 else (lambda b, i: (b, 0, 0))

    kernel = functools.partial(_rel_attn_kernel, head=head,
                               roll_like_jnp=_pltpu_roll_matches_jnp())

    # TODO(synk): for very long T add a key-axis ("arbitrary") grid dimension with an
    # online-softmax accumulator so (tq, P_pad) score tiles shrink further (v7x VMEM).
    ctx = pl.pallas_call(
        kernel,
        grid=(B, nq),
        in_specs=[
            pl.BlockSpec((1, tq, H), lambda b, i: (b, i, 0)),     # q (tiled)
            pl.BlockSpec((1, T, H), lambda b, i: (b, 0, 0)),      # k (resident over i)
            pl.BlockSpec((1, T, H), lambda b, i: (b, 0, 0)),      # v (resident over i)
            pl.BlockSpec((1, P_pad, H), pos_map),                 # pos (resident)
            pl.BlockSpec((1, H), lambda b, i: (0, 0)),            # bias_k (flattened)
            pl.BlockSpec((1, H), lambda b, i: (0, 0)),            # bias_p (flattened)
            pl.BlockSpec((1, 1, T), lambda b, i: (b, 0, 0)),      # mask
        ],
        out_specs=pl.BlockSpec((1, tq, H), lambda b, i: (b, i, 0)),
        out_shape=jax.ShapeDtypeStruct((B, T, H), cdt),
        scratch_shapes=[pltpu.VMEM((tq, H), jnp.float32)],
        compiler_params=pltpu.CompilerParams(
            dimension_semantics=("parallel", "parallel"),
            vmem_limit_bytes=_vmem_limit_bytes(T, tq, P_pad, H,
                                               jnp.dtype(cdt).itemsize),
        ),
    )(q, k, v, p, bias_k, bias_p, mask_i)

    return _dense(ctx, params["Wout"], params["bout"])


def ref_forward(params, query, key, value, pos_emb, mask):
    """Pure-JAX mirror of the PyTorch forward (including the pad/view rel_shift)."""
    head = params["head_size"]
    B, T, H = query.shape
    d = H // head
    P = pos_emb.shape[1]
    if pos_emb.shape[0] == 1:
        pos_emb = jnp.broadcast_to(pos_emb, (B, P, H))

    q = _dense(query, params["Wq"], params["bq"]).reshape(B, T, head, d).transpose(0, 2, 1, 3)
    k = _dense(key, params["Wk"], params["bk_lin"]).reshape(B, T, head, d).transpose(0, 2, 1, 3)
    v = _dense(value, params["Wv"], params["bv"]).reshape(B, T, head, d).transpose(0, 2, 1, 3)
    p = _dense(pos_emb, params["Wpos"]).reshape(B, P, head, d).transpose(0, 2, 1, 3)

    qT = q.transpose(0, 2, 1, 3)                             # (B, T, head, d)
    query_k = (qT + params["bias_k"]).transpose(0, 2, 1, 3)  # (B, head, T, d)
    query_p = (qT + params["bias_p"]).transpose(0, 2, 1, 3)

    score_k = jnp.einsum("bhtd,bhsd->bhts", query_k, k)
    score_p = jnp.einsum("bhtd,bhpd->bhtp", query_p, p)

    zero_pad = jnp.zeros_like(score_p[..., :1])
    xp = jnp.concatenate([zero_pad, score_p], axis=-1)       # (B, h, T, P+1)
    xp = xp.reshape(B, head, P + 1, T)
    sp = xp[:, :, 1:].reshape(B, head, T, P)[..., : P // 2 + 1]

    score = (score_k + sp) / math.sqrt(d)
    maskb = mask[:, None, :, :] == 0                         # (B, 1, 1, T)
    score = jnp.where(maskb, jnp.finfo(jnp.float32).min, score)
    attn = jax.nn.softmax(score, axis=-1)
    attn = jnp.where(maskb, 0.0, attn)
    x = jnp.einsum("bhts,bhsd->bhtd", attn, v)
    x = x.transpose(0, 2, 1, 3).reshape(B, T, H)
    return _dense(x, params["Wout"], params["bout"])


def init_params(rng, head, hidden):
    d = hidden // head
    ks = jax.random.split(rng, 11)

    def lin_w(k):
        return jax.random.normal(k, (hidden, hidden), jnp.float32) / math.sqrt(hidden)

    def lin_b(k):
        return jax.random.normal(k, (hidden,), jnp.float32) * 0.02

    xav = math.sqrt(6.0 / (head + d))
    return dict(
        head_size=head,
        Wq=lin_w(ks[0]), bq=lin_b(ks[1]),
        Wk=lin_w(ks[2]), bk_lin=lin_b(ks[3]),
        Wv=lin_w(ks[4]), bv=lin_b(ks[5]),
        Wout=lin_w(ks[6]), bout=lin_b(ks[7]),
        Wpos=lin_w(ks[8]),
        bias_k=jax.random.uniform(ks[9], (head, d), jnp.float32, -xav, xav),
        bias_p=jax.random.uniform(ks[10], (head, d), jnp.float32, -xav, xav),
    )


if __name__ == "__main__":
    B, T, heads, hidden = 2, 8, 4, 32
    P = 2 * T - 1

    root = jax.random.PRNGKey(0)
    kp, kx, kpos = jax.random.split(root, 3)
    params = init_params(kp, heads, hidden)

    # Self-attention input (the module's intended use) + batch-invariant rel-pos table.
    x = jax.random.normal(kx, (B, T, hidden), jnp.float32)
    pos_emb = jax.random.normal(kpos, (1, P, hidden), jnp.float32)

    lengths = jnp.array([T, T - 2], dtype=jnp.int32)
    mask = (jnp.arange(T)[None, :] < lengths[:, None]).astype(jnp.int32)[:, None, :]  # (B,1,T)

    ref = ref_forward(params, x, x, x, pos_emb, mask)

    # f32 MXU operands: tight check (slack only for the EUP approx reciprocal).
    out_f32 = rel_position_mha(params, x, x, x, pos_emb, mask,
                               compute_dtype=jnp.float32)
    out_f32 = jax.block_until_ready(out_f32)
    assert out_f32.shape == (B, T, hidden)
    err32 = float(jnp.max(jnp.abs(out_f32.astype(jnp.float32) - ref)))
    assert jnp.allclose(out_f32.astype(jnp.float32), ref, atol=2e-2, rtol=2e-2), \
        f"f32 max_err={err32}"

    # bf16 MXU operands + bf16 output (softmax / accumulation still f32).
    out_bf16 = rel_position_mha(params, x, x, x, pos_emb, mask,
                                compute_dtype=jnp.bfloat16)
    out_bf16 = jax.block_until_ready(out_bf16)
    err16 = float(jnp.max(jnp.abs(out_bf16.astype(jnp.float32) - ref)))
    assert jnp.allclose(out_bf16.astype(jnp.float32), ref, atol=2e-1, rtol=2e-1), \
        f"bf16 max_err={err16}"

    print("KERNEL_OK")
</pallas_src>

<mosaic_0001>
module attributes {stable_mosaic.version = 11 : i64} {
  func.func @k(%arg0: memref<8x128xf32, #tpu.memory_space<vmem>>, %arg1: memref<8x128xf32, #tpu.memory_space<vmem>>) attributes {dimension_semantics = [], scalar_prefetch = 0 : i64, scratch_operands = 0 : i64, tpu.core_type = #tpu.core_type<tc>} {
    %c0 = arith.constant 0 : index
    %c0_0 = arith.constant 0 : index
    %0 = vector.load %arg0[%c0, %c0_0] : memref<8x128xf32, #tpu.memory_space<vmem>>, vector<8x128xf32>
    %c1_i32 = arith.constant 1 : i32
    %1 = tpu.dynamic_rotate %0 by %c1_i32 dim 1 : vector<8x128xf32>, i32 -> vector<8x128xf32>
    %c0_1 = arith.constant 0 : index
    %c0_2 = arith.constant 0 : index
    %2 = vector.load %arg1[%c0_1, %c0_2] : memref<8x128xf32, #tpu.memory_space<vmem>>, vector<8x128xf32>
    tpu.vector_store %arg1[%c0_1, %c0_2], %1 {strides = array<i32>} : memref<8x128xf32, #tpu.memory_space<vmem>>, vector<8x128xf32>,
    return
  }
}

</mosaic_0001>

<llo_original>
// kernel: tpu_custom_call.1
$region0: #{tpu_custom_call.1}
  #allocation0 [shape = 'u32[]', space=smem, size = 0x4, offset = 0x4, fixed_abs, tag = 'smem constant byte address 0x4 - core index']
  #allocation1 [shape = 'u32[144,128]{1,0:T(1,128)}', space=vmem, size = 0x12000, scoped, tag = 'internal scratch']
  %s0 = inlined_call_operand.hbm [shape: f32[8,128], index: 0, kind: input, shape index: {}]
  %s1 = inlined_call_operand.hbm [shape: f32[8,128], index: 1, kind: output, shape index: {}]
  %s2 = sld [smem:[#allocation0]]
  $region18: #{tpu_custom_call.1} parent=0
    _
  %s4 = ssub.s32 1, %s2
  %s5 = scalar_select 0, %s4, %s2
  $region1: #{tpu_custom_call.1} parent=0
    #allocation2 [shape = 'u8[4096]{0}', space=vmem, size = 0x1000, scoped, tag = 'input window, operand 0, single buffered']
    #allocation3 [shape = 's32[1]{0}', space=sflag, size = 0x4, scoped, tag = 'scoped memory for tpu_custom_call.1']
    #allocation4 [shape = 's32[1]{0}', space=sflag, size = 0x4, scoped, tag = 'scoped memory for tpu_custom_call.1']
    #allocation5 [shape = 'u8[4096]{0}', space=vmem, size = 0x1000, scoped, tag = 'output window, operand 0, single buffered']
    %6 = vsyncpa [#allocation3], 0
    %7 = vsyncpa [#allocation4], 0
    // Predicated region
    $region2: #{tpu_custom_call.1} parent=1 // pred_check
      _
    $region3: #{tpu_custom_call.1} parent=1 // pred_check_branch
      %9 = sbr.rel (0) target = $region5
    $region4: #{tpu_custom_call.1} parent=1 // pred_region
      %s11 = ssub.s32 128, 128
      %12 = vsyncadd [#allocation3], %s11
      %s14 = sshll.u32 [#allocation2], 4
      %s15 = int_to_ptr.vmem [resolvable:$true] %s14
      %17 = dma.hbm_to_vmem [thread:$0]  %s0, 128, %s15, [#allocation3]
    $region5: #{tpu_custom_call.1} parent=1 // pred_fallthru
      _
    // Predicated region
    $region6: #{tpu_custom_call.1} parent=1 // pred_check
      _
    $region7: #{tpu_custom_call.1} parent=1 // pred_check_branch
      %19 = sbr.rel (0) target = $region9
    $region8: #{tpu_custom_call.1} parent=1 // pred_region
      %20 = dma.done [#allocation3], 128
    $region9: #{tpu_custom_call.1} parent=1 // pred_fallthru
      _
    %v21 = vld [vmem:[#allocation2] sm:$0xff]
    %22 = vrot.lane.b32.xlu0 %v21, 1
    %v23 = vpop.permute.xlu0 %22
    %24 = vst [vmem:[#allocation5] sm:$0xff] %v23
    // Predicated region
    $region10: #{tpu_custom_call.1} parent=1 // pred_check
      _
    $region11: #{tpu_custom_call.1} parent=1 // pred_check_branch
      %26 = sbr.rel (0) target = $region13
    $region12: #{tpu_custom_call.1} parent=1 // pred_region
      %s28 = ssub.s32 128, 128
      %29 = vsyncadd [#allocation4], %s28
      %s31 = sshll.u32 [#allocation5], 4
      %s32 = int_to_ptr.vmem [resolvable:$true] %s31
      %34 = dma.vmem_to_hbm [thread:$0]  %s32, 128, %s1, [#allocation4]
    $region13: #{tpu_custom_call.1} parent=1 // pred_fallthru
      _
    // Predicated region
    $region14: #{tpu_custom_call.1} parent=1 // pred_check
      _
    $region15: #{tpu_custom_call.1} parent=1 // pred_check_branch
      %36 = sbr.rel (0) target = $region17
    $region16: #{tpu_custom_call.1} parent=1 // pred_region
      %37 = dma.done [#allocation4], 128
    $region17: #{tpu_custom_call.1} parent=1 // pred_fallthru
      _
    %38 = vsyncpa [#allocation3], 1
    %39 = vsyncpa [#allocation4], 1

</llo_original>
